<compile_context>
chip_gen: v7x
topology: tpu7x:2x2x1
jax: 0.10.0
libtpu: 0.0.40
codegen_flags: <defaults>
</compile_context>

<pallas_src>
import jax
import jax.numpy as jnp
from jax.experimental import pallas as pl
from jax.experimental.pallas import tpu as pltpu


def _round_up(n, m):
    return (n + m - 1) // m * m


def _vmem_capacity_bytes():
    try:
        return int(pltpu.get_tpu_info().vmem_capacity_bytes)
    except Exception:
        return 64 << 20  # conservative per-TensorCore figure (v7x)


def _single_buffered_spec(block_shape, index_map):
    """Grid-invariant operand: one VMEM buffer instead of the default two."""
    if hasattr(pl, "Buffered"):
        try:
            return pl.BlockSpec(block_shape, index_map, pipeline_mode=pl.Buffered(1))
        except TypeError:
            pass
    return pl.BlockSpec(block_shape, index_map)


# --------------------------------------------------------------------------
# Parameter folding (run once, at parameter-load time)
# --------------------------------------------------------------------------
def fold_gdc_params(params, eps=1e-5, compute_dtype=jnp.bfloat16):
    """Fold depthwise-conv + BN2 + Linear + BN1 into one (K, E_pad) matrix + bias.

    All algebra is done in f32; only the final M is cast to compute_dtype, so
    bf16 rounding happens exactly once, ahead of the f32-accumulated matmul.
    """
    w_dw = params["w_dw"].astype(jnp.float32)     # (C, 1, 7, 7)
    w_lin = params["w_lin"].astype(jnp.float32)   # (E, C)
    C = w_dw.shape[0]
    HW = w_dw.shape[-2] * w_dw.shape[-1]
    E = w_lin.shape[0]
    K = C * HW

    s2 = params["bn2_gamma"] / jnp.sqrt(params["bn2_var"] + eps)   # (C,)
    b2 = params["bn2_beta"] - params["bn2_mean"] * s2               # (C,)
    s1 = 1.0 / jnp.sqrt(params["bn1_var"] + eps)                    # (E,)
    b1 = -params["bn1_mean"] * s1                                   # (E,)

    w_dw_f = w_dw.reshape(C, HW) * s2[:, None]                      # (C, HW)
    w_lin_f = w_lin.T * s1[None, :]                                 # (C, E)
    # M[c*HW + p, e] matches a plain NCHW flatten of x (no transpose needed).
    M = (w_dw_f[:, :, None] * w_lin_f[:, None, :]).reshape(K, E)    # (K, E) f32
    bias = (b2 @ w_lin.T) * s1 + b1                                 # (E,)   f32

    E_pad = _round_up(E, 128)
    M = jnp.pad(M, ((0, 0), (0, E_pad - E))).astype(compute_dtype)
    bias = jnp.pad(bias, (0, E_pad - E)).reshape(1, E_pad).astype(jnp.float32)
    return {"M": M, "bias": bias, "C": C, "HW": HW, "E": E, "E_pad": E_pad, "K": K}


# --------------------------------------------------------------------------
# Kernels
# --------------------------------------------------------------------------
def _gdc_fused_kernel(x_ref, m_ref, bias_ref, out_ref):
    # x_ref: (TB, K) bf16 | m_ref: (K, E_pad) bf16 | bias_ref: (1, E_pad) f32
    out_ref[...] = (
        jnp.dot(x_ref[...], m_ref[...], preferred_element_type=jnp.float32)
        + bias_ref[...]
    )


def _gdc_ktiled_kernel(x_ref, m_ref, bias_ref, out_ref, acc_ref):
    # Accumulate over the K grid axis in an f32 VMEM scratch.
    k = pl.program_id(1)

    @pl.when(k == 0)
    def _():
        acc_ref[...] = jnp.zeros_like(acc_ref)

    acc_ref[...] += jnp.dot(
        x_ref[...], m_ref[...], preferred_element_type=jnp.float32
    )

    @pl.when(k == pl.num_programs(1) - 1)
    def _():
        out_ref[...] = acc_ref[...] + bias_ref[...]


# --------------------------------------------------------------------------
# Forward
# --------------------------------------------------------------------------
def gdc_forward(x_nchw, folded, *, block_b=128, force_k_tiled=False, max_tk=None):
    """x_nchw: (B, C, 7, 7). folded: output of fold_gdc_params. Returns (B, E) f32."""
    B, C, H, W = x_nchw.shape
    # The 'global conv == single matmul' identity needs kernel size == spatial
    # size, no padding, stride 1 (which is what GDC uses).
    assert (H, W) == (7, 7), "GDC requires 7x7 spatial input"
    assert C == folded["C"] and H * W == folded["HW"]

    M, bias = folded["M"], folded["bias"]
    K, E, E_pad = folded["K"], folded["E"], folded["E_pad"]
    cdt = M.dtype
    x_it = jnp.dtype(cdt).itemsize
    m_it = jnp.dtype(cdt).itemsize

    # ---- batch tiling: sublane-aligned, >= 2 grid steps when possible -------
    B_pad = _round_up(B, 8)
    TB = min(_round_up(block_b, 8), B_pad)
    if B_pad // TB < 2 and B_pad >= 16:
        TB = max(8, _round_up(B_pad // 2, 8))
    B_pad = _round_up(B_pad, TB)

    # x flattened in NCHW order matches M's (c*HW + p) row order -> no transpose.
    # (In a full model the upstream layer should emit bf16 directly so this cast
    # fuses into its epilogue instead of an extra pass over x.)
    x2d = x_nchw.reshape(B, K).astype(cdt)
    if B_pad > B:
        x2d = jnp.pad(x2d, ((0, B_pad - B), (0, 0)))

    cap = _vmem_capacity_bytes()
    budget = int(cap * 0.8)

    # Footprint of the single-matmul path: 2x-buffered x/out, 1x-buffered M/bias.
    fused_bytes = (
        2 * TB * K * x_it + K * E_pad * m_it + 2 * TB * E_pad * 4 + 8 * E_pad * 4
    )
    use_fused = (not force_k_tiled) and (fused_bytes <= budget)

    if use_fused:
        vmem_limit = int(
            min(cap * 0.9, max(fused_bytes * 1.5 + (2 << 20), 32 << 20))
        )
        cost = pl.CostEstimate(
            flops=2 * B_pad * K * E_pad,
            transcendentals=0,
            bytes_accessed=B_pad * K * x_it
            + K * E_pad * m_it
            + B_pad * E_pad * 4
            + E_pad * 4,
        )
        out = pl.pallas_call(
            _gdc_fused_kernel,
            out_shape=jax.ShapeDtypeStruct((B_pad, E_pad), jnp.float32),
            grid_spec=pltpu.PrefetchScalarGridSpec(
                num_scalar_prefetch=0,
                grid=(B_pad // TB,),
                in_specs=[
                    pl.BlockSpec((TB, K), lambda i: (i, 0)),           # x streamed
                    _single_buffered_spec((K, E_pad), lambda i: (0, 0)),  # M resident
                    _single_buffered_spec((1, E_pad), lambda i: (0, 0)),  # bias
                ],
                out_specs=pl.BlockSpec((TB, E_pad), lambda i: (i, 0)),
            ),
            compiler_params=pltpu.CompilerParams(
                dimension_semantics=("parallel",),
                vmem_limit_bytes=vmem_limit,
            ),
            cost_estimate=cost,
        )(x2d, M, bias)
        return out[:B, :E]

    # ---- K-tiled accumulator fallback: VMEM bounded independent of C --------
    fixed = TB * E_pad * 4 + 2 * TB * E_pad * 4 + 8 * E_pad * 4  # acc + out + bias
    per_tk = 2 * TB * x_it + 2 * E_pad * m_it                    # x + M (2x buffered)
    tk_max = max(128, ((budget - fixed) // per_tk) // 128 * 128)
    if max_tk is not None:
        tk_max = max(128, min(tk_max, _round_up(max_tk, 128)))
    tk_max = min(tk_max, _round_up(K, 128))
    # Prefer a TK that divides K exactly (no per-call K padding of x / M).
    TK = tk_max
    for cand in range(tk_max, 0, -128):
        if K % cand == 0:
            TK = cand
            break
    K_pad = _round_up(K, TK)
    if K_pad > K:
        x2d = jnp.pad(x2d, ((0, 0), (0, K_pad - K)))
        M = jnp.pad(M, ((0, K_pad - K), (0, 0)))

    kt_bytes = fixed + per_tk * TK
    vmem_limit = int(min(cap * 0.9, max(kt_bytes * 1.5 + (2 << 20), 32 << 20)))
    cost = pl.CostEstimate(
        flops=2 * B_pad * K_pad * E_pad,
        transcendentals=0,
        bytes_accessed=B_pad * K_pad * x_it
        + K_pad * E_pad * m_it
        + B_pad * E_pad * 4
        + E_pad * 4,
    )
    out = pl.pallas_call(
        _gdc_ktiled_kernel,
        out_shape=jax.ShapeDtypeStruct((B_pad, E_pad), jnp.float32),
        grid_spec=pltpu.PrefetchScalarGridSpec(
            num_scalar_prefetch=0,
            grid=(B_pad // TB, K_pad // TK),
            in_specs=[
                pl.BlockSpec((TB, TK), lambda i, k: (i, k)),           # x streamed
                pl.BlockSpec((TK, E_pad), lambda i, k: (k, 0)),        # M streamed
                _single_buffered_spec((1, E_pad), lambda i, k: (0, 0)),  # bias
            ],
            out_specs=pl.BlockSpec((TB, E_pad), lambda i, k: (i, 0)),
            scratch_shapes=[pltpu.VMEM((TB, E_pad), jnp.float32)],
        ),
        compiler_params=pltpu.CompilerParams(
            dimension_semantics=("parallel", "arbitrary"),
            vmem_limit_bytes=vmem_limit,
        ),
        cost_estimate=cost,
    )(x2d, M, bias)
    return out[:B, :E]


# --------------------------------------------------------------------------
# Pure-JAX reference (PyTorch inference semantics)
# --------------------------------------------------------------------------
def gdc_reference(x_nchw, params, eps=1e-5):
    B, C, H, W = x_nchw.shape
    dw = jnp.einsum("bchw,chw->bc", x_nchw, params["w_dw"].reshape(C, H, W))
    h = (dw - params["bn2_mean"]) / jnp.sqrt(params["bn2_var"] + eps) * \
        params["bn2_gamma"] + params["bn2_beta"]
    z = h @ params["w_lin"].T
    return (z - params["bn1_mean"]) / jnp.sqrt(params["bn1_var"] + eps)


if __name__ == "__main__":
    B, C, E, H, W = 4, 32, 16, 7, 7   # GDC requires 7x7 spatial input

    key = jax.random.PRNGKey(0)
    kx, kdw, kl, km2, kv2, kg2, kb2, km1, kv1 = jax.random.split(key, 9)

    x = jax.random.normal(kx, (B, C, H, W), dtype=jnp.float32)

    params = {
        "w_dw": jax.random.normal(kdw, (C, 1, H, W), dtype=jnp.float32) * 0.1,
        "w_lin": jax.random.normal(kl, (E, C), dtype=jnp.float32) * 0.1,
        # BatchNorm2d(C): affine params + running stats (inference semantics)
        "bn2_gamma": 1.0 + 0.1 * jax.random.normal(kg2, (C,), dtype=jnp.float32),
        "bn2_beta": 0.1 * jax.random.normal(kb2, (C,), dtype=jnp.float32),
        "bn2_mean": 0.1 * jax.random.normal(km2, (C,), dtype=jnp.float32),
        "bn2_var": jnp.abs(jax.random.normal(kv2, (C,), dtype=jnp.float32)) + 0.5,
        # BatchNorm1d(E, affine=False): running stats only
        "bn1_mean": 0.1 * jax.random.normal(km1, (E,), dtype=jnp.float32),
        "bn1_var": jnp.abs(jax.random.normal(kv1, (E,), dtype=jnp.float32)) + 0.5,
    }

    # Fold once at parameter-load time (hoisted out of the per-call path).
    folded = fold_gdc_params(params)            # bf16 M, f32 bias
    ref = gdc_reference(x, params)

    # Fused single-matmul path.
    out = jax.block_until_ready(gdc_forward(x, folded))
    assert out.shape == (B, E)
    assert jnp.allclose(out, ref, atol=3e-2, rtol=3e-2), (
        float(jnp.max(jnp.abs(out - ref))))

    # K-tiled accumulator fallback (used when the resident M would not fit VMEM).
    out_kt = jax.block_until_ready(
        gdc_forward(x, folded, force_k_tiled=True, max_tk=512))
    assert out_kt.shape == (B, E)
    assert jnp.allclose(out_kt, ref, atol=3e-2, rtol=3e-2), (
        float(jnp.max(jnp.abs(out_kt - ref))))

    print("KERNEL_OK")
</pallas_src>

<mosaic_0001>
module attributes {stable_mosaic.version = 11 : i64} {
  func.func @_gdc_fused_kernel(%arg0: i32, %arg1: memref<8x1568xbf16, #tpu.memory_space<vmem>>, %arg2: memref<1568x128xbf16, #tpu.memory_space<vmem>>, %arg3: memref<1x128xf32, #tpu.memory_space<vmem>>, %arg4: memref<8x128xf32, #tpu.memory_space<vmem>>) attributes {dimension_semantics = [#tpu.dimension_semantics<parallel>], iteration_bounds = array<i64: 1>, scalar_prefetch = 0 : i64, scratch_operands = 0 : i64, tpu.core_type = #tpu.core_type<tc>, window_params = [{transform_indices = @transform_0, window_bounds = array<i64: 8, 1568>}, {pipeline_mode = #tpu.pipeline_mode<synchronous>, transform_indices = @transform_1, window_bounds = array<i64: 1568, 128>}, {pipeline_mode = #tpu.pipeline_mode<synchronous>, transform_indices = @transform_2, window_bounds = array<i64: 1, 128>}, {transform_indices = @transform_3, window_bounds = array<i64: 8, 128>}]} {
    %c0 = arith.constant 0 : index
    %c0_0 = arith.constant 0 : index
    %0 = vector.load %arg1[%c0, %c0_0] : memref<8x1568xbf16, #tpu.memory_space<vmem>>, vector<8x1568xbf16>
    %c0_1 = arith.constant 0 : index
    %c0_2 = arith.constant 0 : index
    %1 = vector.load %arg2[%c0_1, %c0_2] : memref<1568x128xbf16, #tpu.memory_space<vmem>>, vector<1568x128xbf16>
    %cst = arith.constant dense<0.000000e+00> : vector<8x128xf32>
    %2 = tpu.matmul %0, %1, %cst {dimension_numbers = #tpu.dot_dimension_numbers<[1], [0], [0], [1], [0, 0, 1, 1], [], []>} : vector<8x1568xbf16>, vector<1568x128xbf16>, vector<8x128xf32> -> vector<8x128xf32>
    %c0_3 = arith.constant 0 : index
    %c0_4 = arith.constant 0 : index
    %3 = vector.load %arg3[%c0_3, %c0_4] : memref<1x128xf32, #tpu.memory_space<vmem>>, vector<1x128xf32>
    %4 = vector.broadcast %3 : vector<1x128xf32> to vector<8x128xf32>
    %5 = arith.addf %2, %4 : vector<8x128xf32>
    %c0_5 = arith.constant 0 : index
    %c0_6 = arith.constant 0 : index
    %6 = vector.load %arg4[%c0_5, %c0_6] : memref<8x128xf32, #tpu.memory_space<vmem>>, vector<8x128xf32>
    tpu.vector_store %arg4[%c0_5, %c0_6], %5 {strides = array<i32>} : memref<8x128xf32, #tpu.memory_space<vmem>>, vector<8x128xf32>,
    return
  }
  func.func @transform_0(%arg0: i32) -> (i32, i32) {
    %c0_i32 = arith.constant 0 : i32
    %c0_i32_0 = arith.constant 0 : i32
    return %arg0, %c0_i32 : i32, i32
  }
  func.func @transform_1(%arg0: i32) -> (i32, i32) {
    %c0_i32 = arith.constant 0 : i32
    %c0_i32_0 = arith.constant 0 : i32
    %c0_i32_1 = arith.constant 0 : i32
    return %c0_i32, %c0_i32_0 : i32, i32
  }
  func.func @transform_2(%arg0: i32) -> (i32, i32) {
    %c0_i32 = arith.constant 0 : i32
    %c0_i32_0 = arith.constant 0 : i32
    %c0_i32_1 = arith.constant 0 : i32
    return %c0_i32, %c0_i32_0 : i32, i32
  }
  func.func @transform_3(%arg0: i32) -> (i32, i32) {
    %c0_i32 = arith.constant 0 : i32
    %c0_i32_0 = arith.constant 0 : i32
    return %arg0, %c0_i32 : i32, i32
  }
}

</mosaic_0001>

<llo_original>
// kernel: tpu_custom_call.1
$region0: #{tpu_custom_call.1}
  #allocation0 [shape = 'u32[]', space=smem, size = 0x4, offset = 0x4, fixed_abs, tag = 'smem constant byte address 0x4 - core index']
  #allocation1 [shape = 'u32[144,128]{1,0:T(1,128)}', space=vmem, size = 0x12000, scoped, tag = 'internal scratch']
  %s0 = inlined_call_operand.hbm [shape: bf16[8,1568], index: 0, kind: input, shape index: {}]
  %s1 = inlined_call_operand.hbm [shape: bf16[1568,128], index: 1, kind: input, shape index: {}]
  %s2 = inlined_call_operand.vmem [shape: f32[1,128], index: 2, kind: input, shape index: {}]
  %s3 = inlined_call_operand.hbm [shape: f32[8,128], index: 3, kind: output, shape index: {}]
  %s4 = sld [smem:[#allocation0]]
  $region30: #{tpu_custom_call.1} parent=0
    _
  %s6 = ssub.s32 1, %s4
  %s7 = scalar_select 0, %s6, %s4
  $region1: #{tpu_custom_call.1} parent=0
    #allocation2 [shape = 'u8[26624]{0}', space=vmem, size = 0x6800, scoped, tag = 'input window, operand 0, single buffered']
    #allocation3 [shape = 's32[1]{0}', space=sflag, size = 0x4, scoped, tag = 'scoped memory for tpu_custom_call.1']
    #allocation4 [shape = 's32[1]{0}', space=sflag, size = 0x4, scoped, tag = 'scoped memory for tpu_custom_call.1']
    #allocation5 [shape = 'u8[401408]{0}', space=vmem, size = 0x62000, scoped, tag = 'input window, operand 1, single buffered']
    #allocation6 [shape = 's32[1]{0}', space=sflag, size = 0x4, scoped, tag = 'scoped memory for tpu_custom_call.1']
    #allocation7 [shape = 'u8[4096]{0}', space=vmem, size = 0x1000, scoped, tag = 'output window, operand 0, single buffered']
    %8 = vsyncpa [#allocation3], 0
    %9 = vsyncpa [#allocation6], 0
    %10 = vsyncpa [#allocation4], 0
    // Predicated region
    $region2: #{tpu_custom_call.1} parent=1 // pred_check
      _
    $region3: #{tpu_custom_call.1} parent=1 // pred_check_branch
      %12 = sbr.rel (0) target = $region5
    $region4: #{tpu_custom_call.1} parent=1 // pred_region
      %s14 = ssub.s32 832, 832
      %15 = vsyncadd [#allocation3], %s14
      %s17 = sshll.u32 [#allocation2], 4
      %s18 = int_to_ptr.vmem [resolvable:$true] %s17
      %20 = dma.hbm_to_vmem [thread:$0]  %s0, 832, %s18, [#allocation3]
    $region5: #{tpu_custom_call.1} parent=1 // pred_fallthru
      _
    // Predicated region
    $region6: #{tpu_custom_call.1} parent=1 // pred_check
      _
    $region7: #{tpu_custom_call.1} parent=1 // pred_check_branch
      %22 = sbr.rel (0) target = $region9
    $region8: #{tpu_custom_call.1} parent=1 // pred_region
      %s24 = ssub.s32 12544, 12544
      %25 = vsyncadd [#allocation6], %s24
      %s26 = sshll.u32 [#allocation5], 4
      %s27 = int_to_ptr.vmem [resolvable:$true] %s26
      %32 = dma.hbm_to_vmem [thread:$0]  %s1, 12544, %s27, [#allocation6], 64, 64, 4
    $region9: #{tpu_custom_call.1} parent=1 // pred_fallthru
      _
    // Predicated region
    $region10: #{tpu_custom_call.1} parent=1 // pred_check
      _
    $region11: #{tpu_custom_call.1} parent=1 // pred_check_branch
      %34 = sbr.rel (0) target = $region13
    $region12: #{tpu_custom_call.1} parent=1 // pred_region
      _
    $region13: #{tpu_custom_call.1} parent=1 // pred_fallthru
      _
    // Predicated region
    $region14: #{tpu_custom_call.1} parent=1 // pred_check
      _
    $region15: #{tpu_custom_call.1} parent=1 // pred_check_branch
      %36 = sbr.rel (0) target = $region17
    $region16: #{tpu_custom_call.1} parent=1 // pred_region
      %37 = dma.done [#allocation3], 832
    $region17: #{tpu_custom_call.1} parent=1 // pred_fallthru
      _
    // Predicated region
    $region18: #{tpu_custom_call.1} parent=1 // pred_check
      _
    $region19: #{tpu_custom_call.1} parent=1 // pred_check_branch
      %39 = sbr.rel (0) target = $region21
    $region20: #{tpu_custom_call.1} parent=1 // pred_region
      %40 = dma.done [#allocation6], 12544
    $region21: #{tpu_custom_call.1} parent=1 // pred_fallthru
      _
    %v42 = vld [vmem:[#allocation2] sm:$0xff]
    %v43 = vld [vmem:[#allocation2 + $0x8] sm:$0xff]
    %v44 = vld [vmem:[#allocation2 + $0x10] sm:$0xff]
    %v45 = vld [vmem:[#allocation2 + $0x18] sm:$0xff]
    %v46 = vld [vmem:[#allocation2 + $0x20] sm:$0xff]
    %v47 = vld [vmem:[#allocation2 + $0x28] sm:$0xff]
    %v48 = vld [vmem:[#allocation2 + $0x30] sm:$0xf]
    %v49 = vld [vmem:[#allocation5] sm:$0xf]
    %v50 = vld [vmem:[#allocation5 + $0x4] sm:$0xf]
    %v51 = vld [vmem:[#allocation5 + $0x8] sm:$0xf]
    %v52 = vld [vmem:[#allocation5 + $0xc] sm:$0xf]
    %v53 = vld [vmem:[#allocation5 + $0x10] sm:$0xf]
    %v54 = vld [vmem:[#allocation5 + $0x14] sm:$0xf]
    %v55 = vld [vmem:[#allocation5 + $0x18] sm:$0xf]
    %v56 = vld [vmem:[#allocation5 + $0x1c] sm:$0xf]
    %v57 = vld [vmem:[#allocation5 + $0x20] sm:$0xf]
    %v58 = vld [vmem:[#allocation5 + $0x24] sm:$0xf]
    %v59 = vld [vmem:[#allocation5 + $0x28] sm:$0xf]
    %v60 = vld [vmem:[#allocation5 + $0x2c] sm:$0xf]
    %v61 = vld [vmem:[#allocation5 + $0x30] sm:$0xf]
    %v62 = vld [vmem:[#allocation5 + $0x34] sm:$0xf]
    %v63 = vld [vmem:[#allocation5 + $0x38] sm:$0xf]
    %v64 = vld [vmem:[#allocation5 + $0x3c] sm:$0xf]
    %v65 = vld [vmem:[#allocation5 + $0x40] sm:$0xf]
    %v66 = vld [vmem:[#allocation5 + $0x44] sm:$0xf]
    %v67 = vld [vmem:[#allocation5 + $0x48] sm:$0xf]
    %v68 = vld [vmem:[#allocation5 + $0x4c] sm:$0xf]
    %v69 = vld [vmem:[#allocation5 + $0x50] sm:$0xf]
    %v70 = vld [vmem:[#allocation5 + $0x54] sm:$0xf]
    %v71 = vld [vmem:[#allocation5 + $0x58] sm:$0xf]
    %v72 = vld [vmem:[#allocation5 + $0x5c] sm:$0xf]
    %v73 = vld [vmem:[#allocation5 + $0x60] sm:$0xf]
    %v74 = vld [vmem:[#allocation5 + $0x64] sm:$0xf]
    %v75 = vld [vmem:[#allocation5 + $0x68] sm:$0xf]
    %v76 = vld [vmem:[#allocation5 + $0x6c] sm:$0xf]
    %v77 = vld [vmem:[#allocation5 + $0x70] sm:$0xf]
    %v78 = vld [vmem:[#allocation5 + $0x74] sm:$0xf]
    %v79 = vld [vmem:[#allocation5 + $0x78] sm:$0xf]
    %v80 = vld [vmem:[#allocation5 + $0x7c] sm:$0xf]
    %v81 = vld [vmem:[#allocation5 + $0x80] sm:$0xf]
    %v82 = vld [vmem:[#allocation5 + $0x84] sm:$0xf]
    %v83 = vld [vmem:[#allocation5 + $0x88] sm:$0xf]
    %v84 = vld [vmem:[#allocation5 + $0x8c] sm:$0xf]
    %v85 = vld [vmem:[#allocation5 + $0x90] sm:$0xf]
    %v86 = vld [vmem:[#allocation5 + $0x94] sm:$0xf]
    %v87 = vld [vmem:[#allocation5 + $0x98] sm:$0xf]
    %v88 = vld [vmem:[#allocation5 + $0x9c] sm:$0xf]
    %v89 = vld [vmem:[#allocation5 + $0xa0] sm:$0xf]
    %v90 = vld [vmem:[#allocation5 + $0xa4] sm:$0xf]
    %v91 = vld [vmem:[#allocation5 + $0xa8] sm:$0xf]
    %v92 = vld [vmem:[#allocation5 + $0xac] sm:$0xf]
    %v93 = vld [vmem:[#allocation5 + $0xb0] sm:$0xf]
    %v94 = vld [vmem:[#allocation5 + $0xb4] sm:$0xf]
    %v95 = vld [vmem:[#allocation5 + $0xb8] sm:$0xf]
    %v96 = vld [vmem:[#allocation5 + $0xbc] sm:$0xf]
    %v97 = vld [vmem:[#allocation5 + $0xc0] sm:$0xf]
    %v98 = vld [vmem:[#allocation5 + $0xc4] sm:$0xf]
    %v99 = vld [vmem:[#allocation5 + $0xc8] sm:$0xf]
    %v100 = vld [vmem:[#allocation5 + $0xcc] sm:$0xf]
    %v101 = vld [vmem:[#allocation5 + $0xd0] sm:$0xf]
    %v102 = vld [vmem:[#allocation5 + $0xd4] sm:$0xf]
    %v103 = vld [vmem:[#allocation5 + $0xd8] sm:$0xf]
    %v104 = vld [vmem:[#allocation5 + $0xdc] sm:$0xf]
    %v105 = vld [vmem:[#allocation5 + $0xe0] sm:$0xf]
    %v106 = vld [vmem:[#allocation5 + $0xe4] sm:$0xf]
    %v107 = vld [vmem:[#allocation5 + $0xe8] sm:$0xf]
    %v108 = vld [vmem:[#allocation5 + $0xec] sm:$0xf]
    %v109 = vld [vmem:[#allocation5 + $0xf0] sm:$0xf]
    %v110 = vld [vmem:[#allocation5 + $0xf4] sm:$0xf]
    %v111 = vld [vmem:[#allocation5 + $0xf8] sm:$0xf]
    %v112 = vld [vmem:[#allocation5 + $0xfc] sm:$0xf]
    %v113 = vld [vmem:[#allocation5 + $0x100] sm:$0xf]
    %v114 = vld [vmem:[#allocation5 + $0x104] sm:$0xf]
    %v115 = vld [vmem:[#allocation5 + $0x108] sm:$0xf]
    %v116 = vld [vmem:[#allocation5 + $0x10c] sm:$0xf]
    %v117 = vld [vmem:[#allocation5 + $0x110] sm:$0xf]
    %v118 = vld [vmem:[#allocation5 + $0x114] sm:$0xf]
    %v119 = vld [vmem:[#allocation5 + $0x118] sm:$0xf]
    %v120 = vld [vmem:[#allocation5 + $0x11c] sm:$0xf]
    %v121 = vld [vmem:[#allocation5 + $0x120] sm:$0xf]
    %v122 = vld [vmem:[#allocation5 + $0x124] sm:$0xf]
    %v123 = vld [vmem:[#allocation5 + $0x128] sm:$0xf]
    %v124 = vld [vmem:[#allocation5 + $0x12c] sm:$0xf]
    %v125 = vld [vmem:[#allocation5 + $0x130] sm:$0xf]
    %v126 = vld [vmem:[#allocation5 + $0x134] sm:$0xf]
    %v127 = vld [vmem:[#allocation5 + $0x138] sm:$0xf]
    %v128 = vld [vmem:[#allocation5 + $0x13c] sm:$0xf]
    %v129 = vld [vmem:[#allocation5 + $0x140] sm:$0xf]
    %v130 = vld [vmem:[#allocation5 + $0x144] sm:$0xf]
    %v131 = vld [vmem:[#allocation5 + $0x148] sm:$0xf]
    %v132 = vld [vmem:[#allocation5 + $0x14c] sm:$0xf]
    %v133 = vld [vmem:[#allocation5 + $0x150] sm:$0xf]
    %v134 = vld [vmem:[#allocation5 + $0x154] sm:$0xf]
    %v135 = vld [vmem:[#allocation5 + $0x158] sm:$0xf]
    %v136 = vld [vmem:[#allocation5 + $0x15c] sm:$0xf]
    %v137 = vld [vmem:[#allocation5 + $0x160] sm:$0xf]
    %v138 = vld [vmem:[#allocation5 + $0x164] sm:$0xf]
    %v139 = vld [vmem:[#allocation5 + $0x168] sm:$0xf]
    %v140 = vld [vmem:[#allocation5 + $0x16c] sm:$0xf]
    %v141 = vld [vmem:[#allocation5 + $0x170] sm:$0xf]
    %v142 = vld [vmem:[#allocation5 + $0x174] sm:$0xf]
    %v143 = vld [vmem:[#allocation5 + $0x178] sm:$0xf]
    %v144 = vld [vmem:[#allocation5 + $0x17c] sm:$0xf]
    %v145 = vld [vmem:[#allocation5 + $0x180] sm:$0xf]
    %v146 = vld [vmem:[#allocation5 + $0x184] sm:$0xf]
    %v147 = vld [vmem:[#allocation5 + $0x188] sm:$0xf]
    %v148 = vld [vmem:[#allocation5 + $0x18c] sm:$0xf]
    %v149 = vld [vmem:[#allocation5 + $0x190] sm:$0xf]
    %v150 = vld [vmem:[#allocation5 + $0x194] sm:$0xf]
    %v151 = vld [vmem:[#allocation5 + $0x198] sm:$0xf]
    %v152 = vld [vmem:[#allocation5 + $0x19c] sm:$0xf]
    %v153 = vld [vmem:[#allocation5 + $0x1a0] sm:$0xf]
    %v154 = vld [vmem:[#allocation5 + $0x1a4] sm:$0xf]
    %v155 = vld [vmem:[#allocation5 + $0x1a8] sm:$0xf]
    %v156 = vld [vmem:[#allocation5 + $0x1ac] sm:$0xf]
    %v157 = vld [vmem:[#allocation5 + $0x1b0] sm:$0xf]
    %v158 = vld [vmem:[#allocation5 + $0x1b4] sm:$0xf]
    %v159 = vld [vmem:[#allocation5 + $0x1b8] sm:$0xf]
    %v160 = vld [vmem:[#allocation5 + $0x1bc] sm:$0xf]
    %v161 = vld [vmem:[#allocation5 + $0x1c0] sm:$0xf]
    %v162 = vld [vmem:[#allocation5 + $0x1c4] sm:$0xf]
    %v163 = vld [vmem:[#allocation5 + $0x1c8] sm:$0xf]
    %v164 = vld [vmem:[#allocation5 + $0x1cc] sm:$0xf]
    %v165 = vld [vmem:[#allocation5 + $0x1d0] sm:$0xf]
    %v166 = vld [vmem:[#allocation5 + $0x1d4] sm:$0xf]
    %v167 = vld [vmem:[#allocation5 + $0x1d8] sm:$0xf]
    %v168 = vld [vmem:[#allocation5 + $0x1dc] sm:$0xf]
    %v169 = vld [vmem:[#allocation5 + $0x1e0] sm:$0xf]
    %v170 = vld [vmem:[#allocation5 + $0x1e4] sm:$0xf]
    %v171 = vld [vmem:[#allocation5 + $0x1e8] sm:$0xf]
    %v172 = vld [vmem:[#allocation5 + $0x1ec] sm:$0xf]
    %v173 = vld [vmem:[#allocation5 + $0x1f0] sm:$0xf]
    %v174 = vld [vmem:[#allocation5 + $0x1f4] sm:$0xf]
    %v175 = vld [vmem:[#allocation5 + $0x1f8] sm:$0xf]
    %v176 = vld [vmem:[#allocation5 + $0x1fc] sm:$0xf]
    %v177 = vld [vmem:[#allocation5 + $0x200] sm:$0xf]
    %v178 = vld [vmem:[#allocation5 + $0x204] sm:$0xf]
    %v179 = vld [vmem:[#allocation5 + $0x208] sm:$0xf]
    %v180 = vld [vmem:[#allocation5 + $0x20c] sm:$0xf]
    %v181 = vld [vmem:[#allocation5 + $0x210] sm:$0xf]
    %v182 = vld [vmem:[#allocation5 + $0x214] sm:$0xf]
    %v183 = vld [vmem:[#allocation5 + $0x218] sm:$0xf]
    %v184 = vld [vmem:[#allocation5 + $0x21c] sm:$0xf]
    %v185 = vld [vmem:[#allocation5 + $0x220] sm:$0xf]
    %v186 = vld [vmem:[#allocation5 + $0x224] sm:$0xf]
    %v187 = vld [vmem:[#allocation5 + $0x228] sm:$0xf]
    %v188 = vld [vmem:[#allocation5 + $0x22c] sm:$0xf]
    %v189 = vld [vmem:[#allocation5 + $0x230] sm:$0xf]
    %v190 = vld [vmem:[#allocation5 + $0x234] sm:$0xf]
    %v191 = vld [vmem:[#allocation5 + $0x238] sm:$0xf]
    %v192 = vld [vmem:[#allocation5 + $0x23c] sm:$0xf]
    %v193 = vld [vmem:[#allocation5 + $0x240] sm:$0xf]
    %v194 = vld [vmem:[#allocation5 + $0x244] sm:$0xf]
    %v195 = vld [vmem:[#allocation5 + $0x248] sm:$0xf]
    %v196 = vld [vmem:[#allocation5 + $0x24c] sm:$0xf]
    %v197 = vld [vmem:[#allocation5 + $0x250] sm:$0xf]
    %v198 = vld [vmem:[#allocation5 + $0x254] sm:$0xf]
    %v199 = vld [vmem:[#allocation5 + $0x258] sm:$0xf]
    %v200 = vld [vmem:[#allocation5 + $0x25c] sm:$0xf]
    %v201 = vld [vmem:[#allocation5 + $0x260] sm:$0xf]
    %v202 = vld [vmem:[#allocation5 + $0x264] sm:$0xf]
    %v203 = vld [vmem:[#allocation5 + $0x268] sm:$0xf]
    %v204 = vld [vmem:[#allocation5 + $0x26c] sm:$0xf]
    %v205 = vld [vmem:[#allocation5 + $0x270] sm:$0xf]
    %v206 = vld [vmem:[#allocation5 + $0x274] sm:$0xf]
    %v207 = vld [vmem:[#allocation5 + $0x278] sm:$0xf]
    %v208 = vld [vmem:[#allocation5 + $0x27c] sm:$0xf]
    %v209 = vld [vmem:[#allocation5 + $0x280] sm:$0xf]
    %v210 = vld [vmem:[#allocation5 + $0x284] sm:$0xf]
    %v211 = vld [vmem:[#allocation5 + $0x288] sm:$0xf]
    %v212 = vld [vmem:[#allocation5 + $0x28c] sm:$0xf]
    %v213 = vld [vmem:[#allocation5 + $0x290] sm:$0xf]
    %v214 = vld [vmem:[#allocation5 + $0x294] sm:$0xf]
    %v215 = vld [vmem:[#allocation5 + $0x298] sm:$0xf]
    %v216 = vld [vmem:[#allocation5 + $0x29c] sm:$0xf]
    %v217 = vld [vmem:[#allocation5 + $0x2a0] sm:$0xf]
    %v218 = vld [vmem:[#allocation5 + $0x2a4] sm:$0xf]
    %v219 = vld [vmem:[#allocation5 + $0x2a8] sm:$0xf]
    %v220 = vld [vmem:[#allocation5 + $0x2ac] sm:$0xf]
    %v221 = vld [vmem:[#allocation5 + $0x2b0] sm:$0xf]
    %v222 = vld [vmem:[#allocation5 + $0x2b4] sm:$0xf]
    %v223 = vld [vmem:[#allocation5 + $0x2b8] sm:$0xf]
    %v224 = vld [vmem:[#allocation5 + $0x2bc] sm:$0xf]
    %v225 = vld [vmem:[#allocation5 + $0x2c0] sm:$0xf]
    %v226 = vld [vmem:[#allocation5 + $0x2c4] sm:$0xf]
    %v227 = vld [vmem:[#allocation5 + $0x2c8] sm:$0xf]
    %v228 = vld [vmem:[#allocation5 + $0x2cc] sm:$0xf]
    %v229 = vld [vmem:[#allocation5 + $0x2d0] sm:$0xf]
    %v230 = vld [vmem:[#allocation5 + $0x2d4] sm:$0xf]
    %v231 = vld [vmem:[#allocation5 + $0x2d8] sm:$0xf]
    %v232 = vld [vmem:[#allocation5 + $0x2dc] sm:$0xf]
    %v233 = vld [vmem:[#allocation5 + $0x2e0] sm:$0xf]
    %v234 = vld [vmem:[#allocation5 + $0x2e4] sm:$0xf]
    %v235 = vld [vmem:[#allocation5 + $0x2e8] sm:$0xf]
    %v236 = vld [vmem:[#allocation5 + $0x2ec] sm:$0xf]
    %v237 = vld [vmem:[#allocation5 + $0x2f0] sm:$0xf]
    %v238 = vld [vmem:[#allocation5 + $0x2f4] sm:$0xf]
    %v239 = vld [vmem:[#allocation5 + $0x2f8] sm:$0xf]
    %v240 = vld [vmem:[#allocation5 + $0x2fc] sm:$0xf]
    %v241 = vld [vmem:[#allocation5 + $0x300] sm:$0xf]
    %v242 = vld [vmem:[#allocation5 + $0x304] sm:$0xf]
    %v243 = vld [vmem:[#allocation5 + $0x308] sm:$0xf]
    %v244 = vld [vmem:[#allocation5 + $0x30c] sm:$0xf]
    %v245 = vld [vmem:[%s2] sm:$0x1]
    %v247 = vlaneseq
    %v248 = vshrl.u32 %v247, 7
    %v249 = vsub.s32 0, %v248
    %v250 = vrot.slane %v245, %v249
    %v259 = vunpack.c.l.b16 %v42
    %v260 = vunpack.c.h.b16 %v42
    %v261 = vunpack.c.l.b16 %v43
    %v262 = vunpack.c.h.b16 %v43
    %v263 = vunpack.c.l.b16 %v44
    %v264 = vunpack.c.h.b16 %v44
    %v265 = vunpack.c.l.b16 %v45
    %v266 = vunpack.c.h.b16 %v45
    %v267 = vunpack.c.l.b16 %v46
    %v268 = vunpack.c.h.b16 %v46
    %v269 = vunpack.c.l.b16 %v47
    %v270 = vunpack.c.h.b16 %v47
    %v271 = vunpack.c.l.b16 %v48
    %v272 = vpack.c.b16 %v259, %v259
    %v273 = vpack.c.b16 %v260, %v260
    %v274 = vpack.c.b16 %v261, %v261
    %v275 = vpack.c.b16 %v262, %v262
    %v276 = vpack.c.b16 %v263, %v263
    %v277 = vpack.c.b16 %v264, %v264
    %v278 = vpack.c.b16 %v265, %v265
    %v279 = vpack.c.b16 %v266, %v266
    %v280 = vpack.c.b16 %v267, %v267
    %v281 = vpack.c.b16 %v268, %v268
    %v282 = vpack.c.b16 %v269, %v269
    %v283 = vpack.c.b16 %v270, %v270
    %v284 = vpack.c.b16 %v271, %v271
    %v493 = vunpack.c.l.b16 %v49
    %v494 = vunpack.c.l.b16 %v50
    %v495 = vunpack.c.l.b16 %v51
    %v496 = vunpack.c.l.b16 %v52
    %v497 = vunpack.c.l.b16 %v53
    %v498 = vunpack.c.l.b16 %v54
    %v499 = vunpack.c.l.b16 %v55
    %v500 = vunpack.c.l.b16 %v56
    %v501 = vunpack.c.l.b16 %v57
    %v502 = vunpack.c.l.b16 %v58
    %v503 = vunpack.c.l.b16 %v59
    %v504 = vunpack.c.l.b16 %v60
    %v505 = vunpack.c.l.b16 %v61
    %v506 = vunpack.c.l.b16 %v62
    %v507 = vunpack.c.l.b16 %v63
    %v508 = vunpack.c.l.b16 %v64
    %v509 = vunpack.c.l.b16 %v65
    %v510 = vunpack.c.l.b16 %v66
    %v511 = vunpack.c.l.b16 %v67
    %v512 = vunpack.c.l.b16 %v68
    %v513 = vunpack.c.l.b16 %v69
    %v514 = vunpack.c.l.b16 %v70
    %v515 = vunpack.c.l.b16 %v71
    %v516 = vunpack.c.l.b16 %v72
    %v517 = vunpack.c.l.b16 %v73
    %v518 = vunpack.c.l.b16 %v74
    %v519 = vunpack.c.l.b16 %v75
    %v520 = vunpack.c.l.b16 %v76
    %v521 = vunpack.c.l.b16 %v77
    %v522 = vunpack.c.l.b16 %v78
    %v523 = vunpack.c.l.b16 %v79
    %v524 = vunpack.c.l.b16 %v80
    %v525 = vunpack.c.l.b16 %v81
    %v526 = vunpack.c.l.b16 %v82
    %v527 = vunpack.c.l.b16 %v83
    %v528 = vunpack.c.l.b16 %v84
    %v529 = vunpack.c.l.b16 %v85
    %v530 = vunpack.c.l.b16 %v86
    %v531 = vunpack.c.l.b16 %v87
    %v532 = vunpack.c.l.b16 %v88
    %v533 = vunpack.c.l.b16 %v89
    %v534 = vunpack.c.l.b16 %v90
    %v535 = vunpack.c.l.b16 %v91
    %v536 = vunpack.c.l.b16 %v92
    %v537 = vunpack.c.l.b16 %v93
    %v538 = vunpack.c.l.b16 %v94
    %v539 = vunpack.c.l.b16 %v95
    %v540 = vunpack.c.l.b16 %v96
    %v541 = vunpack.c.l.b16 %v97
    %v542 = vunpack.c.l.b16 %v98
    %v543 = vunpack.c.l.b16 %v99
    %v544 = vunpack.c.l.b16 %v100
    %v545 = vunpack.c.l.b16 %v101
    %v546 = vunpack.c.l.b16 %v102
    %v547 = vunpack.c.l.b16 %v103
    %v548 = vunpack.c.l.b16 %v104
    %v549 = vunpack.c.l.b16 %v105
    %v550 = vunpack.c.l.b16 %v106
    %v551 = vunpack.c.l.b16 %v107
    %v552 = vunpack.c.l.b16 %v108
    %v553 = vunpack.c.l.b16 %v109
    %v554 = vunpack.c.l.b16 %v110
    %v555 = vunpack.c.l.b16 %v111
    %v556 = vunpack.c.l.b16 %v112
    %v557 = vunpack.c.l.b16 %v113
    %v558 = vunpack.c.l.b16 %v114
    %v559 = vunpack.c.l.b16 %v115
    %v560 = vunpack.c.l.b16 %v116
    %v561 = vunpack.c.l.b16 %v117
    %v562 = vunpack.c.l.b16 %v118
    %v563 = vunpack.c.l.b16 %v119
    %v564 = vunpack.c.l.b16 %v120
    %v565 = vunpack.c.l.b16 %v121
    %v566 = vunpack.c.l.b16 %v122
    %v567 = vunpack.c.l.b16 %v123
    %v568 = vunpack.c.l.b16 %v124
    %v569 = vunpack.c.l.b16 %v125
    %v570 = vunpack.c.l.b16 %v126
    %v571 = vunpack.c.l.b16 %v127
    %v572 = vunpack.c.l.b16 %v128
    %v573 = vunpack.c.l.b16 %v129
    %v574 = vunpack.c.l.b16 %v130
    %v575 = vunpack.c.l.b16 %v131
    %v576 = vunpack.c.l.b16 %v132
    %v577 = vunpack.c.l.b16 %v133
    %v578 = vunpack.c.l.b16 %v134
    %v579 = vunpack.c.l.b16 %v135
    %v580 = vunpack.c.l.b16 %v136
    %v581 = vunpack.c.l.b16 %v137
    %v582 = vunpack.c.l.b16 %v138
    %v583 = vunpack.c.l.b16 %v139
    %v584 = vunpack.c.l.b16 %v140
    %v585 = vunpack.c.l.b16 %v141
    %v586 = vunpack.c.l.b16 %v142
    %v587 = vunpack.c.l.b16 %v143
    %v588 = vunpack.c.l.b16 %v144
    %v589 = vunpack.c.l.b16 %v145
    %v590 = vunpack.c.l.b16 %v146
    %v591 = vunpack.c.l.b16 %v147
    %v592 = vunpack.c.l.b16 %v148
    %v593 = vunpack.c.l.b16 %v149
    %v594 = vunpack.c.l.b16 %v150
    %v595 = vunpack.c.l.b16 %v151
    %v596 = vunpack.c.l.b16 %v152
    %v597 = vunpack.c.l.b16 %v153
    %v598 = vunpack.c.l.b16 %v154
    %v599 = vunpack.c.l.b16 %v155
    %v600 = vunpack.c.l.b16 %v156
    %v601 = vunpack.c.l.b16 %v157
    %v602 = vunpack.c.l.b16 %v158
    %v603 = vunpack.c.l.b16 %v159
    %v604 = vunpack.c.l.b16 %v160
    %v605 = vunpack.c.l.b16 %v161
    %v606 = vunpack.c.l.b16 %v162
    %v607 = vunpack.c.l.b16 %v163
    %v608 = vunpack.c.l.b16 %v164
    %v609 = vunpack.c.l.b16 %v165
    %v610 = vunpack.c.l.b16 %v166
    %v611 = vunpack.c.l.b16 %v167
    %v612 = vunpack.c.l.b16 %v168
    %v613 = vunpack.c.l.b16 %v169
    %v614 = vunpack.c.l.b16 %v170
    %v615 = vunpack.c.l.b16 %v171
    %v616 = vunpack.c.l.b16 %v172
    %v617 = vunpack.c.l.b16 %v173
    %v618 = vunpack.c.l.b16 %v174
    %v619 = vunpack.c.l.b16 %v175
    %v620 = vunpack.c.l.b16 %v176
    %v621 = vunpack.c.l.b16 %v177
    %v622 = vunpack.c.l.b16 %v178
    %v623 = vunpack.c.l.b16 %v179
    %v624 = vunpack.c.l.b16 %v180
    %v625 = vunpack.c.l.b16 %v181
    %v626 = vunpack.c.l.b16 %v182
    %v627 = vunpack.c.l.b16 %v183
    %v628 = vunpack.c.l.b16 %v184
    %v629 = vunpack.c.l.b16 %v185
    %v630 = vunpack.c.l.b16 %v186
    %v631 = vunpack.c.l.b16 %v187
    %v632 = vunpack.c.l.b16 %v188
    %v633 = vunpack.c.l.b16 %v189
    %v634 = vunpack.c.l.b16 %v190
    %v635 = vunpack.c.l.b16 %v191
    %v636 = vunpack.c.l.b16 %v192
    %v637 = vunpack.c.l.b16 %v193
    %v638 = vunpack.c.l.b16 %v194
    %v639 = vunpack.c.l.b16 %v195
    %v640 = vunpack.c.l.b16 %v196
    %v641 = vunpack.c.l.b16 %v197
    %v642 = vunpack.c.l.b16 %v198
    %v643 = vunpack.c.l.b16 %v199
    %v644 = vunpack.c.l.b16 %v200
    %v645 = vunpack.c.l.b16 %v201
    %v646 = vunpack.c.l.b16 %v202
    %v647 = vunpack.c.l.b16 %v203
    %v648 = vunpack.c.l.b16 %v204
    %v649 = vunpack.c.l.b16 %v205
    %v650 = vunpack.c.l.b16 %v206
    %v651 = vunpack.c.l.b16 %v207
    %v652 = vunpack.c.l.b16 %v208
    %v653 = vunpack.c.l.b16 %v209
    %v654 = vunpack.c.l.b16 %v210
    %v655 = vunpack.c.l.b16 %v211
    %v656 = vunpack.c.l.b16 %v212
    %v657 = vunpack.c.l.b16 %v213
    %v658 = vunpack.c.l.b16 %v214
    %v659 = vunpack.c.l.b16 %v215
    %v660 = vunpack.c.l.b16 %v216
    %v661 = vunpack.c.l.b16 %v217
    %v662 = vunpack.c.l.b16 %v218
    %v663 = vunpack.c.l.b16 %v219
    %v664 = vunpack.c.l.b16 %v220
    %v665 = vunpack.c.l.b16 %v221
    %v666 = vunpack.c.l.b16 %v222
    %v667 = vunpack.c.l.b16 %v223
    %v668 = vunpack.c.l.b16 %v224
    %v669 = vunpack.c.l.b16 %v225
    %v670 = vunpack.c.l.b16 %v226
    %v671 = vunpack.c.l.b16 %v227
    %v672 = vunpack.c.l.b16 %v228
    %v673 = vunpack.c.l.b16 %v229
    %v674 = vunpack.c.l.b16 %v230
    %v675 = vunpack.c.l.b16 %v231
    %v676 = vunpack.c.l.b16 %v232
    %v677 = vunpack.c.l.b16 %v233
    %v678 = vunpack.c.l.b16 %v234
    %v679 = vunpack.c.l.b16 %v235
    %v680 = vunpack.c.l.b16 %v236
    %v681 = vunpack.c.l.b16 %v237
    %v682 = vunpack.c.l.b16 %v238
    %v683 = vunpack.c.l.b16 %v239
    %v684 = vunpack.c.l.b16 %v240
    %v685 = vunpack.c.l.b16 %v241
    %v686 = vunpack.c.l.b16 %v242
    %v687 = vunpack.c.l.b16 %v243
    %v688 = vunpack.c.l.b16 %v244
    %v689 = vpack.c.b16 %v494, %v493
    %v690 = vpack.c.b16 %v496, %v495
    %v691 = vpack.c.b16 %v498, %v497
    %v692 = vpack.c.b16 %v500, %v499
    %v693 = vpack.c.b16 %v502, %v501
    %v694 = vpack.c.b16 %v504, %v503
    %v695 = vpack.c.b16 %v506, %v505
    %v696 = vpack.c.b16 %v508, %v507
    %v697 = vpack.c.b16 %v510, %v509
    %v698 = vpack.c.b16 %v512, %v511
    %v699 = vpack.c.b16 %v514, %v513
    %v700 = vpack.c.b16 %v516, %v515
    %v701 = vpack.c.b16 %v518, %v517
    %v702 = vpack.c.b16 %v520, %v519
    %v703 = vpack.c.b16 %v522, %v521
    %v704 = vpack.c.b16 %v524, %v523
    %v705 = vpack.c.b16 %v526, %v525
    %v706 = vpack.c.b16 %v528, %v527
    %v707 = vpack.c.b16 %v530, %v529
    %v708 = vpack.c.b16 %v532, %v531
    %v709 = vpack.c.b16 %v534, %v533
    %v710 = vpack.c.b16 %v536, %v535
    %v711 = vpack.c.b16 %v538, %v537
    %v712 = vpack.c.b16 %v540, %v539
    %v713 = vpack.c.b16 %v542, %v541
    %v714 = vpack.c.b16 %v544, %v543
    %v715 = vpack.c.b16 %v546, %v545
    %v716 = vpack.c.b16 %v548, %v547
    %v717 = vpack.c.b16 %v550, %v549
    %v718 = vpack.c.b16 %v552, %v551
    %v719 = vpack.c.b16 %v554, %v553
    %v720 = vpack.c.b16 %v556, %v555
    %v721 = vpack.c.b16 %v558, %v557
    %v722 = vpack.c.b16 %v560, %v559
    %v723 = vpack.c.b16 %v562, %v561
    %v724 = vpack.c.b16 %v564, %v563
    %v725 = vpack.c.b16 %v566, %v565
    %v726 = vpack.c.b16 %v568, %v567
    %v727 = vpack.c.b16 %v570, %v569
    %v728 = vpack.c.b16 %v572, %v571
    %v729 = vpack.c.b16 %v574, %v573
    %v730 = vpack.c.b16 %v576, %v575
    %v731 = vpack.c.b16 %v578, %v577
    %v732 = vpack.c.b16 %v580, %v579
    %v733 = vpack.c.b16 %v582, %v581
    %v734 = vpack.c.b16 %v584, %v583
    %v735 = vpack.c.b16 %v586, %v585
    %v736 = vpack.c.b16 %v588, %v587
    %v737 = vpack.c.b16 %v590, %v589
    %v738 = vpack.c.b16 %v592, %v591
    %v739 = vpack.c.b16 %v594, %v593
    %v740 = vpack.c.b16 %v596, %v595
    %v741 = vpack.c.b16 %v598, %v597
    %v742 = vpack.c.b16 %v600, %v599
    %v743 = vpack.c.b16 %v602, %v601
    %v744 = vpack.c.b16 %v604, %v603
    %v745 = vpack.c.b16 %v606, %v605
    %v746 = vpack.c.b16 %v608, %v607
    %v747 = vpack.c.b16 %v610, %v609
    %v748 = vpack.c.b16 %v612, %v611
    %v749 = vpack.c.b16 %v614, %v613
    %v750 = vpack.c.b16 %v616, %v615
    %v751 = vpack.c.b16 %v618, %v617
    %v752 = vpack.c.b16 %v620, %v619
    %v753 = vpack.c.b16 %v622, %v621
    %v754 = vpack.c.b16 %v624, %v623
    %v755 = vpack.c.b16 %v626, %v625
    %v756 = vpack.c.b16 %v628, %v627
    %v757 = vpack.c.b16 %v630, %v629
    %v758 = vpack.c.b16 %v632, %v631
    %v759 = vpack.c.b16 %v634, %v633
    %v760 = vpack.c.b16 %v636, %v635
    %v761 = vpack.c.b16 %v638, %v637
    %v762 = vpack.c.b16 %v640, %v639
    %v763 = vpack.c.b16 %v642, %v641
    %v764 = vpack.c.b16 %v644, %v643
    %v765 = vpack.c.b16 %v646, %v645
    %v766 = vpack.c.b16 %v648, %v647
    %v767 = vpack.c.b16 %v650, %v649
    %v768 = vpack.c.b16 %v652, %v651
    %v769 = vpack.c.b16 %v654, %v653
    %v770 = vpack.c.b16 %v656, %v655
    %v771 = vpack.c.b16 %v658, %v657
    %v772 = vpack.c.b16 %v660, %v659
    %v773 = vpack.c.b16 %v662, %v661
    %v774 = vpack.c.b16 %v664, %v663
    %v775 = vpack.c.b16 %v666, %v665
    %v776 = vpack.c.b16 %v668, %v667
    %v777 = vpack.c.b16 %v670, %v669
    %v778 = vpack.c.b16 %v672, %v671
    %v779 = vpack.c.b16 %v674, %v673
    %v780 = vpack.c.b16 %v676, %v675
    %v781 = vpack.c.b16 %v678, %v677
    %v782 = vpack.c.b16 %v680, %v679
    %v783 = vpack.c.b16 %v682, %v681
    %v784 = vpack.c.b16 %v684, %v683
    %v785 = vpack.c.b16 %v686, %v685
    %v786 = vpack.c.b16 %v688, %v687
    %vm885 = vcmask 261120
    %v887 = vsel %vm885, %v284, 0
    %889 = vmatprep.subr.bf16.mxu0 0
    %890 = vmatpush1.bf16.msra.mxu0 %v689
    %891 = vmatprep.subr.bf16.mxu0 0
    %892 = vmatpush1.bf16.msra.mxu0 %v690
    %893 = vmatprep.subr.bf16.mxu0 0
    %894 = vmatpush1.bf16.msra.mxu0 %v691
    %895 = vmatprep.subr.bf16.mxu0 0
    %896 = vmatpush1.bf16.msra.mxu0 %v692
    %897 = vmatprep.subr.bf16.mxu0 0
    %898 = vmatpush1.bf16.msra.mxu0 %v693
    %899 = vmatprep.subr.bf16.mxu0 0
    %900 = vmatpush1.bf16.msra.mxu0 %v694
    %901 = vmatprep.subr.bf16.mxu0 0
    %902 = vmatpush1.bf16.msra.mxu0 %v695
    %903 = vmatprep.subr.bf16.mxu0 0
    %904 = vmatpush1.bf16.msra.mxu0 %v696
    %905 = vmatprep.subr.bf16.mxu0 0
    %906 = vmatpush1.bf16.msra.mxu0 %v697
    %907 = vmatprep.subr.bf16.mxu0 0
    %908 = vmatpush1.bf16.msra.mxu0 %v698
    %909 = vmatprep.subr.bf16.mxu0 0
    %910 = vmatpush1.bf16.msra.mxu0 %v699
    %911 = vmatprep.subr.bf16.mxu0 0
    %912 = vmatpush1.bf16.msra.mxu0 %v700
    %913 = vmatprep.subr.bf16.mxu0 0
    %914 = vmatpush1.bf16.msra.mxu0 %v701
    %915 = vmatprep.subr.bf16.mxu0 0
    %916 = vmatpush1.bf16.msra.mxu0 %v702
    %917 = vmatprep.subr.bf16.mxu0 0
    %918 = vmatpush1.bf16.msra.mxu0 %v703
    %919 = vmatprep.subr.bf16.mxu0 0
    %920 = vmatpush1.bf16.msra.mxu0 %v704
    %921 = vmatprep.mubr.bf16.mxu0 %v273
    %922 = vmatmul.mubr.bf16.gmra.mrb[0].mxu0 %v272
    %v923 = vpop.f32.mrb[0].mxu0
    %v924 = vadd.f32 %v250, %v923
    %v925 = vpop.f32.mrb[0].mxu0
    %v926 = vpop.f32.mrb[0].mxu0
    %v927 = vpop.f32.mrb[0].mxu0
    %928 = vdwg.mxu0
    %929 = vmatprep.subr.bf16.mxu0 0
    %930 = vmatpush1.bf16.msra.mxu0 %v705
    %931 = vmatprep.subr.bf16.mxu0 0
    %932 = vmatpush1.bf16.msra.mxu0 %v706
    %933 = vmatprep.subr.bf16.mxu0 0
    %934 = vmatpush1.bf16.msra.mxu0 %v707
    %935 = vmatprep.subr.bf16.mxu0 0
    %936 = vmatpush1.bf16.msra.mxu0 %v708
    %937 = vmatprep.subr.bf16.mxu0 0
    %938 = vmatpush1.bf16.msra.mxu0 %v709
    %939 = vmatprep.subr.bf16.mxu0 0
    %940 = vmatpush1.bf16.msra.mxu0 %v710
    %941 = vmatprep.subr.bf16.mxu0 0
    %942 = vmatpush1.bf16.msra.mxu0 %v711
    %943 = vmatprep.subr.bf16.mxu0 0
    %944 = vmatpush1.bf16.msra.mxu0 %v712
    %945 = vmatprep.subr.bf16.mxu0 0
    %946 = vmatpush1.bf16.msra.mxu0 %v713
    %947 = vmatprep.subr.bf16.mxu0 0
    %948 = vmatpush1.bf16.msra.mxu0 %v714
    %949 = vmatprep.subr.bf16.mxu0 0
    %950 = vmatpush1.bf16.msra.mxu0 %v715
    %951 = vmatprep.subr.bf16.mxu0 0
    %952 = vmatpush1.bf16.msra.mxu0 %v716
    %953 = vmatprep.subr.bf16.mxu0 0
    %954 = vmatpush1.bf16.msra.mxu0 %v717
    %955 = vmatprep.subr.bf16.mxu0 0
    %956 = vmatpush1.bf16.msra.mxu0 %v718
    %957 = vmatprep.subr.bf16.mxu0 0
    %958 = vmatpush1.bf16.msra.mxu0 %v719
    %959 = vmatprep.subr.bf16.mxu0 0
    %960 = vmatpush1.bf16.msra.mxu0 %v720
    %961 = vmatprep.mubr.bf16.mxu0 %v275
    %962 = vmatmul.mubr.bf16.gmra.mrb[0].mxu0 %v274
    %v963 = vpop.f32.mrb[0].mxu0
    %v964 = vadd.f32 %v924, %v963
    %v965 = vpop.f32.mrb[0].mxu0
    %v966 = vpop.f32.mrb[0].mxu0
    %v967 = vpop.f32.mrb[0].mxu0
    %968 = vdwg.mxu0
    %969 = vmatprep.subr.bf16.mxu0 0
    %970 = vmatpush1.bf16.msra.mxu0 %v721
    %971 = vmatprep.subr.bf16.mxu0 0
    %972 = vmatpush1.bf16.msra.mxu0 %v722
    %973 = vmatprep.subr.bf16.mxu0 0
    %974 = vmatpush1.bf16.msra.mxu0 %v723
    %975 = vmatprep.subr.bf16.mxu0 0
    %976 = vmatpush1.bf16.msra.mxu0 %v724
    %977 = vmatprep.subr.bf16.mxu0 0
    %978 = vmatpush1.bf16.msra.mxu0 %v725
    %979 = vmatprep.subr.bf16.mxu0 0
    %980 = vmatpush1.bf16.msra.mxu0 %v726
    %981 = vmatprep.subr.bf16.mxu0 0
    %982 = vmatpush1.bf16.msra.mxu0 %v727
    %983 = vmatprep.subr.bf16.mxu0 0
    %984 = vmatpush1.bf16.msra.mxu0 %v728
    %985 = vmatprep.subr.bf16.mxu0 0
    %986 = vmatpush1.bf16.msra.mxu0 %v729
    %987 = vmatprep.subr.bf16.mxu0 0
    %988 = vmatpush1.bf16.msra.mxu0 %v730
    %989 = vmatprep.subr.bf16.mxu0 0
    %990 = vmatpush1.bf16.msra.mxu0 %v731
    %991 = vmatprep.subr.bf16.mxu0 0
    %992 = vmatpush1.bf16.msra.mxu0 %v732
    %993 = vmatprep.subr.bf16.mxu0 0
    %994 = vmatpush1.bf16.msra.mxu0 %v733
    %995 = vmatprep.subr.bf16.mxu0 0
    %996 = vmatpush1.bf16.msra.mxu0 %v734
    %997 = vmatprep.subr.bf16.mxu0 0
    %998 = vmatpush1.bf16.msra.mxu0 %v735
    %999 = vmatprep.subr.bf16.mxu0 0
    %1000 = vmatpush1.bf16.msra.mxu0 %v736
    %1001 = vmatprep.mubr.bf16.mxu0 %v277
    %1002 = vmatmul.mubr.bf16.gmra.mrb[0].mxu0 %v276
    %v1003 = vpop.f32.mrb[0].mxu0
    %v1004 = vadd.f32 %v964, %v1003
    %v1005 = vpop.f32.mrb[0].mxu0
    %v1006 = vpop.f32.mrb[0].mxu0
    %v1007 = vpop.f32.mrb[0].mxu0
    %1008 = vdwg.mxu0
    %1009 = vmatprep.subr.bf16.mxu0 0
    %1010 = vmatpush1.bf16.msra.mxu0 %v737
    %1011 = vmatprep.subr.bf16.mxu0 0
    %1012 = vmatpush1.bf16.msra.mxu0 %v738
    %1013 = vmatprep.subr.bf16.mxu0 0
    %1014 = vmatpush1.bf16.msra.mxu0 %v739
    %1015 = vmatprep.subr.bf16.mxu0 0
    %1016 = vmatpush1.bf16.msra.mxu0 %v740
    %1017 = vmatprep.subr.bf16.mxu0 0
    %1018 = vmatpush1.bf16.msra.mxu0 %v741
    %1019 = vmatprep.subr.bf16.mxu0 0
    %1020 = vmatpush1.bf16.msra.mxu0 %v742
    %1021 = vmatprep.subr.bf16.mxu0 0
    %1022 = vmatpush1.bf16.msra.mxu0 %v743
    %1023 = vmatprep.subr.bf16.mxu0 0
    %1024 = vmatpush1.bf16.msra.mxu0 %v744
    %1025 = vmatprep.subr.bf16.mxu0 0
    %1026 = vmatpush1.bf16.msra.mxu0 %v745
    %1027 = vmatprep.subr.bf16.mxu0 0
    %1028 = vmatpush1.bf16.msra.mxu0 %v746
    %1029 = vmatprep.subr.bf16.mxu0 0
    %1030 = vmatpush1.bf16.msra.mxu0 %v747
    %1031 = vmatprep.subr.bf16.mxu0 0
    %1032 = vmatpush1.bf16.msra.mxu0 %v748
    %1033 = vmatprep.subr.bf16.mxu0 0
    %1034 = vmatpush1.bf16.msra.mxu0 %v749
    %1035 = vmatprep.subr.bf16.mxu0 0
    %1036 = vmatpush1.bf16.msra.mxu0 %v750
    %1037 = vmatprep.subr.bf16.mxu0 0
    %1038 = vmatpush1.bf16.msra.mxu0 %v751
    %1039 = vmatprep.subr.bf16.mxu0 0
    %1040 = vmatpush1.bf16.msra.mxu0 %v752
    %1041 = vmatprep.mubr.bf16.mxu0 %v279
    %1042 = vmatmul.mubr.bf16.gmra.mrb[0].mxu0 %v278
    %v1043 = vpop.f32.mrb[0].mxu0
    %v1044 = vadd.f32 %v1004, %v1043
    %v1045 = vpop.f32.mrb[0].mxu0
    %v1046 = vpop.f32.mrb[0].mxu0
    %v1047 = vpop.f32.mrb[0].mxu0
    %1048 = vdwg.mxu0
    %1049 = vmatprep.subr.bf16.mxu0 0
    %1050 = vmatpush1.bf16.msra.mxu0 %v753
    %1051 = vmatprep.subr.bf16.mxu0 0
    %1052 = vmatpush1.bf16.msra.mxu0 %v754
    %1053 = vmatprep.subr.bf16.mxu0 0
    %1054 = vmatpush1.bf16.msra.mxu0 %v755
    %1055 = vmatprep.subr.bf16.mxu0 0
    %1056 = vmatpush1.bf16.msra.mxu0 %v756
    %1057 = vmatprep.subr.bf16.mxu0 0
    %1058 = vmatpush1.bf16.msra.mxu0 %v757
    %1059 = vmatprep.subr.bf16.mxu0 0
    %1060 = vmatpush1.bf16.msra.mxu0 %v758
    %1061 = vmatprep.subr.bf16.mxu0 0
    %1062 = vmatpush1.bf16.msra.mxu0 %v759
    %1063 = vmatprep.subr.bf16.mxu0 0
    %1064 = vmatpush1.bf16.msra.mxu0 %v760
    %1065 = vmatprep.subr.bf16.mxu0 0
    %1066 = vmatpush1.bf16.msra.mxu0 %v761
    %1067 = vmatprep.subr.bf16.mxu0 0
    %1068 = vmatpush1.bf16.msra.mxu0 %v762
    %1069 = vmatprep.subr.bf16.mxu0 0
    %1070 = vmatpush1.bf16.msra.mxu0 %v763
    %1071 = vmatprep.subr.bf16.mxu0 0
    %1072 = vmatpush1.bf16.msra.mxu0 %v764
    %1073 = vmatprep.subr.bf16.mxu0 0
    %1074 = vmatpush1.bf16.msra.mxu0 %v765
    %1075 = vmatprep.subr.bf16.mxu0 0
    %1076 = vmatpush1.bf16.msra.mxu0 %v766
    %1077 = vmatprep.subr.bf16.mxu0 0
    %1078 = vmatpush1.bf16.msra.mxu0 %v767
    %1079 = vmatprep.subr.bf16.mxu0 0
    %1080 = vmatpush1.bf16.msra.mxu0 %v768
    %1081 = vmatprep.mubr.bf16.mxu0 %v281
    %1082 = vmatmul.mubr.bf16.gmra.mrb[0].mxu0 %v280
    %v1083 = vpop.f32.mrb[0].mxu0
    %v1084 = vadd.f32 %v1044, %v1083
    %v1085 = vpop.f32.mrb[0].mxu0
    %v1086 = vpop.f32.mrb[0].mxu0
    %v1087 = vpop.f32.mrb[0].mxu0
    %1088 = vdwg.mxu0
    %1089 = vmatprep.subr.bf16.mxu0 0
    %1090 = vmatpush1.bf16.msra.mxu0 %v769
    %1091 = vmatprep.subr.bf16.mxu0 0
    %1092 = vmatpush1.bf16.msra.mxu0 %v770
    %1093 = vmatprep.subr.bf16.mxu0 0
    %1094 = vmatpush1.bf16.msra.mxu0 %v771
    %1095 = vmatprep.subr.bf16.mxu0 0
    %1096 = vmatpush1.bf16.msra.mxu0 %v772
    %1097 = vmatprep.subr.bf16.mxu0 0
    %1098 = vmatpush1.bf16.msra.mxu0 %v773
    %1099 = vmatprep.subr.bf16.mxu0 0
    %1100 = vmatpush1.bf16.msra.mxu0 %v774
    %1101 = vmatprep.subr.bf16.mxu0 0
    %1102 = vmatpush1.bf16.msra.mxu0 %v775
    %1103 = vmatprep.subr.bf16.mxu0 0
    %1104 = vmatpush1.bf16.msra.mxu0 %v776
    %1105 = vmatprep.subr.bf16.mxu0 0
    %1106 = vmatpush1.bf16.msra.mxu0 %v777
    %1107 = vmatprep.subr.bf16.mxu0 0
    %1108 = vmatpush1.bf16.msra.mxu0 %v778
    %1109 = vmatprep.subr.bf16.mxu0 0
    %1110 = vmatpush1.bf16.msra.mxu0 %v779
    %1111 = vmatprep.subr.bf16.mxu0 0
    %1112 = vmatpush1.bf16.msra.mxu0 %v780
    %1113 = vmatprep.subr.bf16.mxu0 0
    %1114 = vmatpush1.bf16.msra.mxu0 %v781
    %1115 = vmatprep.subr.bf16.mxu0 0
    %1116 = vmatpush1.bf16.msra.mxu0 %v782
    %1117 = vmatprep.subr.bf16.mxu0 0
    %1118 = vmatpush1.bf16.msra.mxu0 %v783
    %1119 = vmatprep.subr.bf16.mxu0 0
    %1120 = vmatpush1.bf16.msra.mxu0 %v784
    %1121 = vmatprep.mubr.bf16.mxu0 %v283
    %1122 = vmatmul.mubr.bf16.gmra.mrb[0].mxu0 %v282
    %v1123 = vpop.f32.mrb[0].mxu0
    %v1124 = vadd.f32 %v1084, %v1123
    %v1125 = vpop.f32.mrb[0].mxu0
    %v1126 = vpop.f32.mrb[0].mxu0
    %v1127 = vpop.f32.mrb[0].mxu0
    %1128 = vdwg.mxu0
    %1129 = vmatprep.subr.bf16.mxu0 0
    %1130 = vmatpush1.bf16.msra.mxu0 %v785
    %1131 = vmatprep.subr.bf16.mxu0 0
    %1132 = vmatpush1.bf16.msra.mxu0 %v786
    %1133 = vmatprep.subr.bf16.mxu0 0
    %1134 = vmatpush1.bf16.msra.mxu0 0
    %1135 = vmatprep.subr.bf16.mxu0 0
    %1136 = vmatpush1.bf16.msra.mxu0 0
    %1137 = vmatprep.subr.bf16.mxu0 0
    %1138 = vmatpush1.bf16.msra.mxu0 0
    %1139 = vmatprep.subr.bf16.mxu0 0
    %1140 = vmatpush1.bf16.msra.mxu0 0
    %1141 = vmatprep.subr.bf16.mxu0 0
    %1142 = vmatpush1.bf16.msra.mxu0 0
    %1143 = vmatprep.subr.bf16.mxu0 0
    %1144 = vmatpush1.bf16.msra.mxu0 0
    %1145 = vmatprep.subr.bf16.mxu0 0
    %1146 = vmatpush1.bf16.msra.mxu0 0
    %1147 = vmatprep.subr.bf16.mxu0 0
    %1148 = vmatpush1.bf16.msra.mxu0 0
    %1149 = vmatprep.subr.bf16.mxu0 0
    %1150 = vmatpush1.bf16.msra.mxu0 0
    %1151 = vmatprep.subr.bf16.mxu0 0
    %1152 = vmatpush1.bf16.msra.mxu0 0
    %1153 = vmatprep.subr.bf16.mxu0 0
    %1154 = vmatpush1.bf16.msra.mxu0 0
    %1155 = vmatprep.subr.bf16.mxu0 0
    %1156 = vmatpush1.bf16.msra.mxu0 0
    %1157 = vmatprep.subr.bf16.mxu0 0
    %1158 = vmatpush1.bf16.msra.mxu0 0
    %1159 = vmatprep.subr.bf16.mxu0 0
    %1160 = vmatpush1.bf16.msra.mxu0 0
    %1161 = vmatprep.mubr.bf16.mxu0 0
    %1162 = vmatmul.mubr.bf16.gmra.mrb[0].mxu0 %v887
    %v1163 = vpop.f32.mrb[0].mxu0
    %v1164 = vadd.f32 %v1124, %v1163
    %v1165 = vpop.f32.mrb[0].mxu0
    %v1166 = vpop.f32.mrb[0].mxu0
    %v1167 = vpop.f32.mrb[0].mxu0
    %1168 = vdwg.mxu0
    %1169 = vst [vmem:[#allocation7] sm:$0xff] %v1164
    // Predicated region
    $region22: #{tpu_custom_call.1} parent=1 // pred_check
      _
    $region23: #{tpu_custom_call.1} parent=1 // pred_check_branch
      %1171 = sbr.rel (0) target = $region25
    $region24: #{tpu_custom_call.1} parent=1 // pred_region
      %s1173 = ssub.s32 128, 128
      %1174 = vsyncadd [#allocation4], %s1173
      %s1176 = sshll.u32 [#allocation7], 4
      %s1177 = int_to_ptr.vmem [resolvable:$true] %s1176
      %1179 = dma.vmem_to_hbm [thread:$0]  %s1177, 128, %s3, [#allocation4]
    $region25: #{tpu_custom_call.1} parent=1 // pred_fallthru
      _
    // Predicated region
    $region26: #{tpu_custom_call.1} parent=1 // pred_check
      _
    $region27: #{tpu_custom_call.1} parent=1 // pred_check_branch
      %1181 = sbr.rel (0) target = $region29
    $region28: #{tpu_custom_call.1} parent=1 // pred_region
      %1182 = dma.done [#allocation4], 128
    $region29: #{tpu_custom_call.1} parent=1 // pred_fallthru
      _
    %1183 = vsyncpa [#allocation3], 1
    %1184 = vsyncpa [#allocation6], 1
    %1185 = vsyncpa [#allocation4], 1

</llo_original>
